<compile_context>
chip_gen: v6e
topology: v6e:2x2x1
jax: 0.10.0
libtpu: 0.0.40
codegen_flags: <defaults>
</compile_context>

<pallas_src>
import functools

import jax
import jax.numpy as jnp
from jax.experimental import pallas as pl
from jax.experimental.pallas import tpu as pltpu

ALPHA = 0.25
GAMMA = 2                           # gamma == 2 -> explicit squaring below
LANE = 128
_LOG_CLIP = -18.420680743952367     # log(1e-8): mirrors torch.clamp(., 1e-8, 1.0)


def _focal_partial_kernel(pred_ref, true_ref, out_ref, *, steps, block_rows,
                          valid_rows, ragged):
    """Accumulates an (8, 128) per-part partial sum of the focal loss."""
    p_id = pl.program_id(0)
    s_id = pl.program_id(1)

    @pl.when(s_id == 0)
    def _():
        out_ref[...] = jnp.zeros_like(out_ref)

    # In-kernel cast: inputs stream in their native dtype (bf16/int8 callers
    # move fewer HBM bytes).
    x = pred_ref[...].astype(jnp.float32)
    t = true_ref[...].astype(jnp.float32)

    # sigmoid / log-sigmoid with one exp + one log per element:
    #   p          = sigmoid(x) = 1 / (1 + exp(-x))
    #   log(p)     = -log(1 + exp(-x))
    #   log(1 - p) = log(p) - x           (exact identity)
    # Both logs are clamped at log(1e-8) to match the module's clamp.
    e = jnp.exp(-x)
    one_plus_e = 1.0 + e
    # EUP reciprocal seed + one Newton step: full f32 accuracy while the
    # divide leaves the VALU slot.
    p = pl.reciprocal(one_plus_e, approx=True)
    p = p * (2.0 - one_plus_e * p)
    neg_lg = -jnp.log(one_plus_e)
    log_p = jnp.maximum(neg_lg, _LOG_CLIP)
    log_1mp = jnp.maximum(neg_lg - x, _LOG_CLIP)

    # pos/neg are mutually exclusive -> one squared difference + one selected
    # (pre-negated) weight instead of two squared terms.
    is_pos = t > 0.0
    d = jnp.where(is_pos, t - p, p)
    w = jnp.where(is_pos, (-ALPHA) * log_p, (ALPHA - 1.0) * log_1mp)
    loss = (d * d) * w              # == -a*pos^2*log_p - (1-a)*neg^2*log_1mp

    if ragged:
        # Mask rows past the logical end (partial last block and the clamped
        # duplicate "overhang" block both contribute exactly 0).
        base_row = (p_id * steps + s_id) * block_rows
        row_ids = base_row + jax.lax.broadcasted_iota(
            jnp.int32, (block_rows, 1), 0)
        loss = jnp.where(row_ids < valid_rows, loss, 0.0)

    # vreg-shaped partial sum: group whole (8, 128) tiles so the reduce is
    # plain full-vreg VALU adds, accumulated straight into the resident
    # output block.
    n_sub = block_rows // 8
    out_ref[...] += loss.reshape(n_sub, 8, LANE).sum(axis=0)


def _round_up(x, m):
    return ((x + m - 1) // m) * m


def _sublane_multiple(dtype):
    itemsize = jnp.dtype(dtype).itemsize
    return 8 * max(1, 4 // itemsize)    # 8 (32-bit), 16 (16-bit), 32 (8-bit)


def _focal_elementwise(y_pred, y_true, alpha=ALPHA):
    """Pure-JAX per-element focal loss (mirrors the PyTorch formulation)."""
    x = y_pred.astype(jnp.float32)
    t = y_true.astype(jnp.float32)
    p = jax.nn.sigmoid(x)
    pos = jnp.where(t > 0.0, t - p, 0.0)
    neg = jnp.where(t > 0.0, 0.0, p)
    return (-alpha * pos * pos * jnp.log(jnp.clip(p, 1e-8, 1.0))
            - (1.0 - alpha) * neg * neg * jnp.log(jnp.clip(1.0 - p, 1e-8, 1.0)))


def multi_label_focal_loss(y_pred, y_true, *, block_rows=4096, num_parts=2):
    """Scalar mean focal loss; matches MultiLabelFocalLoss(reduction='mean')."""
    assert y_pred.shape == y_true.shape
    total = y_pred.size

    pred = y_pred.reshape(-1)   # contiguous flatten: free
    true = y_true.reshape(-1)

    rows = total // LANE
    rem = total - rows * LANE

    # Sub-128-element tail: tiny pure-JAX sum.
    # TODO(synk): when numel % 128 != 0 the prefix slice below costs one extra
    # HBM copy of the inputs; 128-divisible shapes take the zero-copy path.
    tail_sum = jnp.float32(0.0)
    if rem:
        tail_sum = jnp.sum(_focal_elementwise(pred[rows * LANE:],
                                              true[rows * LANE:]))
        if rows:
            pred = jax.lax.slice(pred, (0,), (rows * LANE,))
            true = jax.lax.slice(true, (0,), (rows * LANE,))

    if rows == 0:
        return tail_sum / jnp.float32(total)

    # Lane-dense slab; zero-copy reshape (pred.size == rows * LANE here).
    pred2d = pred.reshape(rows, LANE)
    true2d = true.reshape(rows, LANE)

    # Tile geometry: blocks of (block_rows, 128); no wrapper-side padding.
    sub_m = max(_sublane_multiple(pred.dtype), _sublane_multiple(true.dtype))
    block_rows = max(sub_m, min(_round_up(block_rows, sub_m),
                                _round_up(rows, sub_m)))
    total_blocks = pl.cdiv(rows, block_rows)
    num_parts = max(1, min(num_parts, total_blocks))
    steps = pl.cdiv(total_blocks, num_parts)
    ragged = (num_parts * steps * block_rows != rows)

    kernel = functools.partial(_focal_partial_kernel, steps=steps,
                               block_rows=block_rows, valid_rows=rows,
                               ragged=ragged)

    def in_map(p, s):
        # Clamp: the (at most one) overhang step of the last part re-reads a
        # valid block; its contribution is masked to zero in-kernel.
        return (jnp.minimum(p * steps + s, total_blocks - 1), 0)

    partials = pl.pallas_call(
        kernel,
        out_shape=jax.ShapeDtypeStruct((num_parts * 8, LANE), jnp.float32),
        grid_spec=pltpu.PrefetchScalarGridSpec(
            num_scalar_prefetch=0,
            grid=(num_parts, steps),
            in_specs=[
                pl.BlockSpec((block_rows, LANE), in_map),
                pl.BlockSpec((block_rows, LANE), in_map),
            ],
            out_specs=pl.BlockSpec((8, LANE), lambda p, s: (p, 0)),
        ),
        compiler_params=pltpu.CompilerParams(
            # TODO(synk): on v7x switch the part axis to pltpu.CORE_PARALLEL if
            # an xprof trace shows one TensorCore idle.
            dimension_semantics=("parallel", "arbitrary"),
            vmem_limit_bytes=48 * 1024 * 1024),
    )(pred2d, true2d)

    # Tiny final reduce of the per-part vreg partials; divide by TRUE numel.
    return (jnp.sum(partials) + tail_sum) / jnp.float32(total)


def _focal_loss_ref(y_pred, y_true):
    """Pure-JAX mirror of the PyTorch module (mean reduction)."""
    return _focal_elementwise(y_pred, y_true).mean()


if __name__ == "__main__":
    key = jax.random.PRNGKey(0)
    k1, k2, k3, k4 = jax.random.split(key, 4)

    # Primary: NCHW-style logits + multi-hot labels; 2048 elems -> (16,128)
    # slab, single full block, zero-copy / no masking path.
    shape = (2, 4, 16, 16)
    y_pred = jax.random.normal(k1, shape, dtype=jnp.float32)
    y_true = (jax.random.uniform(k2, shape) > 0.5).astype(jnp.float32)
    out = jax.block_until_ready(multi_label_focal_loss(y_pred, y_true))
    ref = _focal_loss_ref(y_pred, y_true)
    assert jnp.allclose(out, ref, rtol=1e-4, atol=1e-6), (out, ref)

    # Secondary: bf16 streaming, 3 blocks over a (2 parts x 2 steps) grid ->
    # exercises the in-kernel row mask and the clamped duplicate block.
    shape2 = (3, 2, 32, 32)   # 6144 elems -> 48 rows, block_rows=16
    y_pred2 = jax.random.normal(k3, shape2, dtype=jnp.bfloat16)
    y_true2 = (jax.random.uniform(k4, shape2) > 0.5).astype(jnp.bfloat16)
    out2 = jax.block_until_ready(
        multi_label_focal_loss(y_pred2, y_true2, block_rows=16))
    ref2 = _focal_loss_ref(y_pred2, y_true2)
    assert jnp.allclose(out2, ref2, rtol=1e-4, atol=1e-6), (out2, ref2)

    # TODO(synk): reduction='none' (per-element output) path not exposed; only
    # the module's default 'mean' reduction is implemented in-kernel.
    print("KERNEL_OK")
</pallas_src>

<mosaic_0001>
module attributes {stable_mosaic.version = 11 : i64} {
  func.func @_focal_partial_kernel(%arg0: i32, %arg1: i32, %arg2: memref<16x128xf32, #tpu.memory_space<vmem>>, %arg3: memref<16x128xf32, #tpu.memory_space<vmem>>, %arg4: memref<8x128xf32, #tpu.memory_space<vmem>>) attributes {dimension_semantics = [#tpu.dimension_semantics<parallel>, #tpu.dimension_semantics<arbitrary>], iteration_bounds = array<i64: 1, 1>, scalar_prefetch = 0 : i64, scratch_operands = 0 : i64, tpu.core_type = #tpu.core_type<tc>, window_params = [{transform_indices = @transform_0, window_bounds = array<i64: 16, 128>}, {transform_indices = @transform_1, window_bounds = array<i64: 16, 128>}, {transform_indices = @transform_2, window_bounds = array<i64: 8, 128>}]} {
    %c0_i32 = arith.constant 0 : i32
    %0 = arith.cmpi eq, %arg1, %c0_i32 : i32
    %1 = arith.extui %0 : i1 to i32
    %c0_i32_0 = arith.constant 0 : i32
    %2 = arith.cmpi ne, %1, %c0_i32_0 : i32
    scf.if %2 {
      %cst_17 = arith.constant 0.000000e+00 : f32
      %39 = vector.broadcast %cst_17 : f32 to vector<8x128xf32>
      %c0_18 = arith.constant 0 : index
      %c0_19 = arith.constant 0 : index
      %40 = vector.load %arg4[%c0_18, %c0_19] : memref<8x128xf32, #tpu.memory_space<vmem>>, vector<8x128xf32>
      tpu.vector_store %arg4[%c0_18, %c0_19], %39 {strides = array<i32>} : memref<8x128xf32, #tpu.memory_space<vmem>>, vector<8x128xf32>,
    } else {
    }
    %c0 = arith.constant 0 : index
    %c0_1 = arith.constant 0 : index
    %3 = vector.load %arg2[%c0, %c0_1] : memref<16x128xf32, #tpu.memory_space<vmem>>, vector<16x128xf32>
    %c0_2 = arith.constant 0 : index
    %c0_3 = arith.constant 0 : index
    %4 = vector.load %arg3[%c0_2, %c0_3] : memref<16x128xf32, #tpu.memory_space<vmem>>, vector<16x128xf32>
    %cst = arith.constant 0.000000e+00 : f32
    %5 = vector.broadcast %cst : f32 to vector<16x128xf32>
    %6 = arith.subf %5, %3 : vector<16x128xf32>
    %7 = math.exp %6 : vector<16x128xf32>
    %cst_4 = arith.constant 1.000000e+00 : f32
    %8 = vector.broadcast %cst_4 : f32 to vector<16x128xf32>
    %9 = arith.addf %8, %7 : vector<16x128xf32>
    %10 = tpu.reciprocal %9 {approx = true} : vector<16x128xf32> -> vector<16x128xf32>
    %11 = arith.mulf %9, %10 : vector<16x128xf32>
    %cst_5 = arith.constant 2.000000e+00 : f32
    %12 = vector.broadcast %cst_5 : f32 to vector<16x128xf32>
    %13 = arith.subf %12, %11 : vector<16x128xf32>
    %14 = arith.mulf %10, %13 : vector<16x128xf32>
    %15 = math.log %9 : vector<16x128xf32>
    %cst_6 = arith.constant 0.000000e+00 : f32
    %16 = vector.broadcast %cst_6 : f32 to vector<16x128xf32>
    %17 = arith.subf %16, %15 : vector<16x128xf32>
    %cst_7 = arith.constant -18.420681 : f32
    %18 = vector.broadcast %cst_7 : f32 to vector<16x128xf32>
    %19 = arith.maximumf %17, %18 : vector<16x128xf32>
    %20 = arith.subf %17, %3 : vector<16x128xf32>
    %cst_8 = arith.constant -18.420681 : f32
    %21 = vector.broadcast %cst_8 : f32 to vector<16x128xf32>
    %22 = arith.maximumf %20, %21 : vector<16x128xf32>
    %cst_9 = arith.constant 0.000000e+00 : f32
    %23 = vector.broadcast %cst_9 : f32 to vector<16x128xf32>
    %24 = arith.cmpf ogt, %4, %23 : vector<16x128xf32>
    %25 = arith.subf %4, %14 : vector<16x128xf32>
    %26 = arith.select %24, %25, %14 : vector<16x128xi1>, vector<16x128xf32>
    %cst_10 = arith.constant -2.500000e-01 : f32
    %27 = vector.broadcast %cst_10 : f32 to vector<16x128xf32>
    %28 = arith.mulf %27, %19 : vector<16x128xf32>
    %cst_11 = arith.constant -7.500000e-01 : f32
    %29 = vector.broadcast %cst_11 : f32 to vector<16x128xf32>
    %30 = arith.mulf %29, %22 : vector<16x128xf32>
    %31 = arith.select %24, %28, %30 : vector<16x128xi1>, vector<16x128xf32>
    %32 = arith.mulf %26, %26 : vector<16x128xf32>
    %33 = arith.mulf %32, %31 : vector<16x128xf32>
    %c0_12 = arith.constant 0 : index
    %c0_13 = arith.constant 0 : index
    %34 = vector.load %arg4[%c0_12, %c0_13] : memref<8x128xf32, #tpu.memory_space<vmem>>, vector<8x128xf32>
    %35 = vector.shape_cast %33 : vector<16x128xf32> to vector<2x8x128xf32>
    %cst_14 = arith.constant dense<0.000000e+00> : vector<8x128xf32>
    %36 = vector.multi_reduction <add>, %35, %cst_14 [0] : vector<2x8x128xf32> to vector<8x128xf32>
    %37 = arith.addf %34, %36 : vector<8x128xf32>
    %c0_15 = arith.constant 0 : index
    %c0_16 = arith.constant 0 : index
    %38 = vector.load %arg4[%c0_15, %c0_16] : memref<8x128xf32, #tpu.memory_space<vmem>>, vector<8x128xf32>
    tpu.vector_store %arg4[%c0_15, %c0_16], %37 {strides = array<i32>} : memref<8x128xf32, #tpu.memory_space<vmem>>, vector<8x128xf32>,
    return
  }
  func.func @transform_0(%arg0: i32, %arg1: i32) -> (i32, i32) {
    %c1_i32 = arith.constant 1 : i32
    %0 = arith.muli %arg0, %c1_i32 : i32
    %1 = arith.addi %0, %arg1 : i32
    %c0_i32 = arith.constant 0 : i32
    %2 = arith.minsi %1, %c0_i32 : i32
    %c0_i32_0 = arith.constant 0 : i32
    %c0_i32_1 = arith.constant 0 : i32
    return %2, %c0_i32_0 : i32, i32
  }
  func.func @transform_1(%arg0: i32, %arg1: i32) -> (i32, i32) {
    %c1_i32 = arith.constant 1 : i32
    %0 = arith.muli %arg0, %c1_i32 : i32
    %1 = arith.addi %0, %arg1 : i32
    %c0_i32 = arith.constant 0 : i32
    %2 = arith.minsi %1, %c0_i32 : i32
    %c0_i32_0 = arith.constant 0 : i32
    %c0_i32_1 = arith.constant 0 : i32
    return %2, %c0_i32_0 : i32, i32
  }
  func.func @transform_2(%arg0: i32, %arg1: i32) -> (i32, i32) {
    %c0_i32 = arith.constant 0 : i32
    %c0_i32_0 = arith.constant 0 : i32
    return %arg0, %c0_i32 : i32, i32
  }
}

</mosaic_0001>

<llo_original>
// kernel: tpu_custom_call.1
$region0: #{tpu_custom_call.1}
  #allocation0 [shape = 'u32[]', space=smem, size = 0x4, offset = 0x4, fixed_abs, tag = 'smem constant byte address 0x4 - core index']
  #allocation1 [shape = 'u32[144,128]{1,0:T(1,128)}', space=vmem, size = 0x12000, scoped, tag = 'internal scratch']
  %s0 = inlined_call_operand.hbm [shape: f32[16,128], index: 0, kind: input, shape index: {}]
  %s1 = inlined_call_operand.hbm [shape: f32[16,128], index: 1, kind: input, shape index: {}]
  %s2 = inlined_call_operand.hbm [shape: f32[8,128], index: 2, kind: output, shape index: {}]
  %s3 = sld [smem:[#allocation0]]
  $region30: #{tpu_custom_call.1} parent=0
    _
  %s5 = ssub.s32 1, %s3
  %s6 = scalar_select 0, %s5, %s3
  $region1: #{tpu_custom_call.1} parent=0
    #allocation2 [shape = 'u8[8192]{0}', space=vmem, size = 0x2000, scoped, tag = 'input window, operand 0, single buffered']
    #allocation3 [shape = 's32[1]{0}', space=sflag, size = 0x4, scoped, tag = 'scoped memory for tpu_custom_call.1']
    #allocation4 [shape = 's32[1]{0}', space=sflag, size = 0x4, scoped, tag = 'scoped memory for tpu_custom_call.1']
    #allocation5 [shape = 'u8[8192]{0}', space=vmem, size = 0x2000, scoped, tag = 'input window, operand 1, single buffered']
    #allocation6 [shape = 's32[1]{0}', space=sflag, size = 0x4, scoped, tag = 'scoped memory for tpu_custom_call.1']
    #allocation7 [shape = 'u8[4096]{0}', space=vmem, size = 0x1000, scoped, tag = 'output window, operand 0, single buffered']
    %7 = vsyncpa [#allocation3], 0
    %8 = vsyncpa [#allocation6], 0
    %9 = vsyncpa [#allocation4], 0
    // Predicated region
    $region2: #{tpu_custom_call.1} parent=1 // pred_check
      _
    $region3: #{tpu_custom_call.1} parent=1 // pred_check_branch
      %11 = sbr.rel (0) target = $region5
    $region4: #{tpu_custom_call.1} parent=1 // pred_region
      %s12 = sadd.s32 0, 0
      %p13 = scmp.lt.s32.totalorder %s12, 0
      %s14 = scalar_select %p13, %s12, 0
      %s15 = smul.u32 2, %s14
      %s17 = ssub.s32 256, 256
      %18 = vsyncadd [#allocation3], %s17
      %s19 = smul.addr %s15, 128
      %s20 = scalar_lea.hbm %s0, %s19
      %s21 = sshll.u32 [#allocation2], 4
      %s22 = int_to_ptr.vmem [resolvable:$true] %s21
      %27 = dma.hbm_to_vmem [thread:$0]  %s20, 256, %s22, [#allocation3], 128, 128, 8
    $region5: #{tpu_custom_call.1} parent=1 // pred_fallthru
      _
    // Predicated region
    $region6: #{tpu_custom_call.1} parent=1 // pred_check
      _
    $region7: #{tpu_custom_call.1} parent=1 // pred_check_branch
      %29 = sbr.rel (0) target = $region9
    $region8: #{tpu_custom_call.1} parent=1 // pred_region
      %s30 = sadd.s32 0, 0
      %p31 = scmp.lt.s32.totalorder %s30, 0
      %s32 = scalar_select %p31, %s30, 0
      %s33 = smul.u32 2, %s32
      %s35 = ssub.s32 256, 256
      %36 = vsyncadd [#allocation6], %s35
      %s37 = smul.addr %s33, 128
      %s38 = scalar_lea.hbm %s1, %s37
      %s39 = sshll.u32 [#allocation5], 4
      %s40 = int_to_ptr.vmem [resolvable:$true] %s39
      %45 = dma.hbm_to_vmem [thread:$0]  %s38, 256, %s40, [#allocation6], 128, 128, 8
    $region9: #{tpu_custom_call.1} parent=1 // pred_fallthru
      _
    // Predicated region
    $region10: #{tpu_custom_call.1} parent=1 // pred_check
      _
    $region11: #{tpu_custom_call.1} parent=1 // pred_check_branch
      %47 = sbr.rel (0) target = $region13
    $region12: #{tpu_custom_call.1} parent=1 // pred_region
      %48 = dma.done [#allocation3], 256
    $region13: #{tpu_custom_call.1} parent=1 // pred_fallthru
      _
    // Predicated region
    $region14: #{tpu_custom_call.1} parent=1 // pred_check
      _
    $region15: #{tpu_custom_call.1} parent=1 // pred_check_branch
      %50 = sbr.rel (0) target = $region17
    $region16: #{tpu_custom_call.1} parent=1 // pred_region
      %51 = dma.done [#allocation6], 256
    $region17: #{tpu_custom_call.1} parent=1 // pred_fallthru
      _
    %s52 = sadd.s32 0, 0
    %p53 = scmp.lt.s32.totalorder %s52, 0
    %s54 = scalar_select %p53, %s52, 0
    %s55 = smul.u32 2, %s54
    %s56 = sadd.s32 0, 0
    %p57 = scmp.lt.s32.totalorder %s56, 0
    %s58 = scalar_select %p57, %s56, 0
    %s59 = smul.u32 2, %s58
    %p60 = scmp.eq.s32.totalorder 0, 0
    // Predicated region
    $region18: #{tpu_custom_call.1} parent=1 // pred_check
      %p61 = pneg %p60
    $region19: #{tpu_custom_call.1} parent=1 // pred_check_branch
      %63 = sbr.rel (%p61) target = $region21
    $region20: #{tpu_custom_call.1} parent=1 // pred_region
      %64 = vst [vmem:[#allocation7] sm:$0xff] 0.0
    $region21: #{tpu_custom_call.1} parent=1 // pred_fallthru
      _
    %v65 = vld [vmem:[#allocation2] sm:$0xff]
    %v66 = vld [vmem:[#allocation2 + $0x8] sm:$0xff]
    %v67 = vld [vmem:[#allocation5] sm:$0xff]
    %v68 = vld [vmem:[#allocation5 + $0x8] sm:$0xff]
    %v69 = vsub.f32 0.0, %v65
    %v70 = vsub.f32 0.0, %v66
    %v71 = vmul.f32 %v69, 1.442695
    %v72 = vpow.pop %v71
    %v73 = vmul.f32 %v70, 1.442695
    %v74 = vpow.pop %v73
    %v75 = vadd.f32 %v72, 1.0
    %v76 = vadd.f32 %v74, 1.0
    %v77 = vrcp.pop %v75
    %v78 = vrcp.pop %v76
    %v79 = vmul.f32 %v75, %v77
    %v80 = vmul.f32 %v76, %v78
    %v81 = vsub.f32 2.0, %v79
    %v82 = vsub.f32 2.0, %v80
    %v83 = vmul.f32 %v77, %v81
    %v84 = vmul.f32 %v78, %v82
    %v85 = vlog2.pop %v75
    %v86 = vmul.f32 %v85, 0.6931472
    %v87 = vlog2.pop %v76
    %v88 = vmul.f32 %v87, 0.6931472
    %v89 = vsub.f32 0.0, %v86
    %v90 = vsub.f32 0.0, %v88
    %v91 = vmax.f32 %v89, -18.420681
    %v92 = vmax.f32 %v90, -18.420681
    %v93 = vsub.f32 %v89, %v65
    %v94 = vsub.f32 %v90, %v66
    %v95 = vmax.f32 %v93, -18.420681
    %v96 = vmax.f32 %v94, -18.420681
    %vm97 = vcmp.gt.f32.partialorder %v67, 0.0
    %vm98 = vcmp.gt.f32.partialorder %v68, 0.0
    %v99 = vsub.f32 %v67, %v83
    %v100 = vsub.f32 %v68, %v84
    %v101 = vsel %vm97, %v99, %v83
    %v102 = vsel %vm98, %v100, %v84
    %v103 = vmul.f32 %v91, -0.25
    %v104 = vmul.f32 %v92, -0.25
    %v105 = vmul.f32 %v95, -0.75
    %v106 = vmul.f32 %v96, -0.75
    %v107 = vsel %vm97, %v103, %v105
    %v108 = vsel %vm98, %v104, %v106
    %v109 = vmul.f32 %v101, %v101
    %v110 = vmul.f32 %v102, %v102
    %v111 = vmul.f32 %v109, %v107
    %v112 = vmul.f32 %v110, %v108
    %v113 = vld [vmem:[#allocation7] sm:$0xff]
    %v114 = vadd.f32 %v111, %v112
    %v115 = vadd.f32 %v113, %v114
    %116 = vst [vmem:[#allocation7] sm:$0xff] %v115
    // Predicated region
    $region22: #{tpu_custom_call.1} parent=1 // pred_check
      _
    $region23: #{tpu_custom_call.1} parent=1 // pred_check_branch
      %118 = sbr.rel (0) target = $region25
    $region24: #{tpu_custom_call.1} parent=1 // pred_region
      %s120 = ssub.s32 128, 128
      %121 = vsyncadd [#allocation4], %s120
      %s123 = sshll.u32 [#allocation7], 4
      %s124 = int_to_ptr.vmem [resolvable:$true] %s123
      %126 = dma.vmem_to_hbm [thread:$0]  %s124, 128, %s2, [#allocation4]
    $region25: #{tpu_custom_call.1} parent=1 // pred_fallthru
      _
    // Predicated region
    $region26: #{tpu_custom_call.1} parent=1 // pred_check
      _
    $region27: #{tpu_custom_call.1} parent=1 // pred_check_branch
      %128 = sbr.rel (0) target = $region29
    $region28: #{tpu_custom_call.1} parent=1 // pred_region
      %129 = dma.done [#allocation4], 128
    $region29: #{tpu_custom_call.1} parent=1 // pred_fallthru
      _
    %130 = vsyncpa [#allocation3], 1
    %131 = vsyncpa [#allocation6], 1
    %132 = vsyncpa [#allocation4], 1

</llo_original>
